<compile_context>
chip_gen: v7x
topology: tpu7x:2x2x1
jax: 0.10.0
libtpu: 0.0.40
codegen_flags: <defaults>
</compile_context>

<pallas_src>
import functools

import jax
import jax.numpy as jnp
from jax.experimental import pallas as pl
from jax.experimental.pallas import tpu as pltpu


def _round_up(x, m):
    return (x + m - 1) // m * m


def gumbel_vq_kernel(hs_ref, w_ref, b_ref, cb_ref,
                     out_ref, idx_ref, cnt_ref,
                     *, num_groups, vars_padded, tile_rows, valid_rows,
                     need_row_mask):
    TN = hs_ref.shape[0]
    G = num_groups
    Vp = vars_padded

    # weight_proj: (TN, H) @ (H, G*Vp) + bias -> logits (bf16 MXU, f32 accum).
    # Padded code columns have zero weights and -1e30 bias, so argmax ignores them.
    logits = jnp.dot(hs_ref[...], w_ref[...],
                     preferred_element_type=jnp.float32) + b_ref[...]

    iota = jax.lax.broadcasted_iota(jnp.int32, (TN, Vp), 1)

    onehots = []
    idx_cols = []
    for g in range(G):
        lg = logits[:, g * Vp:(g + 1) * Vp]                 # lane-aligned slice
        m = jnp.max(lg, axis=-1, keepdims=True)
        eq = lg == m
        # first maximal index (matches torch argmax tie-breaking)
        idx_g = jnp.min(jnp.where(eq, iota, Vp), axis=-1, keepdims=True)
        onehots.append((iota == idx_g).astype(jnp.float32))
        idx_cols.append(idx_g)

    onehot = jnp.concatenate(onehots, axis=-1)              # (TN, G*Vp)

    # Codevector lookup: one-hot @ block-diagonal codebook -- a single MXU op
    # with a lane-dense (TN, G*Dg) output written straight to out_ref.
    # Kept in f32 so the looked-up codevector values are bit-exact.
    out_ref[...] = jnp.dot(onehot, cb_ref[...],
                           preferred_element_type=jnp.float32)
    idx_ref[...] = jnp.concatenate(idx_cols, axis=-1)       # (TN, G) int32

    # Per-tile code-usage counts (exclude rows padded to the tile boundary);
    # entropy / perplexity / diversity loss are finalized in the wrapper.
    if need_row_mask:
        row0 = pl.program_id(0) * tile_rows
        rows = row0 + jax.lax.broadcasted_iota(jnp.int32, (TN, 1), 0)
        onehot = onehot * (rows < valid_rows).astype(jnp.float32)
    cnt_ref[0] = jnp.sum(onehot, axis=0, keepdims=True)     # (1, G*Vp)


def gumbel_vector_quantizer(hidden_states, weight, bias, codevectors,
                            num_groups, num_vars, diversity_weight=0.1,
                            tile_rows=512):
    """hidden_states: (B, S, H). weight: (H, G*V). bias: (G*V,).
    codevectors: (1, G*V, H//G). Returns (codevectors, codevector_idx, loss)."""
    B, S, H = hidden_states.shape
    N = B * S
    G, V = num_groups, num_vars
    Dg = codevectors.shape[-1]
    GDg = G * Dg

    # Lane-pad the per-group code axis so slices / one-hots are (8,128) aligned.
    Vp = _round_up(max(V, 128), 128)
    GVp = G * Vp

    # Row tiling: multiple of 8 sublanes, VMEM bounded independently of N.
    TN = min(tile_rows, _round_up(N, 8))
    Np = _round_up(N, TN)
    num_tiles = Np // TN

    hs2d = hidden_states.reshape(N, H)
    if Np != N:
        hs2d = jnp.pad(hs2d, ((0, Np - N), (0, 0)))
    hs2d = hs2d.astype(jnp.bfloat16)                        # bf16 MXU input

    w = weight.reshape(H, G, V)
    w = jnp.pad(w, ((0, 0), (0, 0), (0, Vp - V))).reshape(H, GVp)
    w = w.astype(jnp.bfloat16)                              # bf16 MXU input

    b = bias.astype(jnp.float32).reshape(G, V)
    b = jnp.pad(b, ((0, 0), (0, Vp - V)), constant_values=-1e30).reshape(1, GVp)

    # Block-diagonal (G*Vp, G*Dg) codebook -> one fused lookup for all groups.
    cv = codevectors.astype(jnp.float32).reshape(G, V, Dg)
    cv = jnp.pad(cv, ((0, 0), (0, Vp - V), (0, 0)))
    eye = jnp.eye(G, dtype=jnp.float32)
    cb = (cv[:, :, None, :] * eye[:, None, :, None]).reshape(GVp, GDg)

    kernel = functools.partial(
        gumbel_vq_kernel,
        num_groups=G, vars_padded=Vp, tile_rows=TN, valid_rows=N,
        need_row_mask=(Np != N))

    # Explicit VMEM budget: double-buffered blocks + intermediate headroom,
    # clamped so it is safe on v5e (16 MiB default scoped) and v7x (64 MiB phys).
    block_bytes = (2 * TN * H * 2 + 2 * H * GVp * 2 + 2 * GVp * 4
                   + 2 * GVp * GDg * 4 + 2 * TN * GDg * 4 + 2 * TN * G * 4
                   + 2 * GVp * 4 + 6 * TN * GVp * 4)
    vmem_limit = int(min(max(2 * block_bytes, 16 << 20), 48 << 20))

    out, idx, counts = pl.pallas_call(
        kernel,
        grid=(num_tiles,),
        in_specs=[
            pl.BlockSpec((TN, H), lambda i: (i, 0)),        # hidden states tile
            pl.BlockSpec((H, GVp), lambda i: (0, 0)),       # weight (resident)
            pl.BlockSpec((1, GVp), lambda i: (0, 0)),       # bias (resident)
            pl.BlockSpec((GVp, GDg), lambda i: (0, 0)),     # codebook (resident)
        ],
        out_specs=(
            pl.BlockSpec((TN, GDg), lambda i: (i, 0)),      # codevectors
            pl.BlockSpec((TN, G), lambda i: (i, 0)),        # indices
            pl.BlockSpec((1, 1, GVp), lambda i: (i, 0, 0)),  # per-tile counts
        ),
        out_shape=(
            jax.ShapeDtypeStruct((Np, GDg), jnp.float32),
            jax.ShapeDtypeStruct((Np, G), jnp.int32),
            jax.ShapeDtypeStruct((num_tiles, 1, GVp), jnp.float32),
        ),
        compiler_params=pltpu.CompilerParams(
            dimension_semantics=("parallel",),
            vmem_limit_bytes=vmem_limit),
    )(hs2d, w, b, cb)

    codevecs = out[:N].reshape(B, S, GDg)
    idx = idx[:N]                                           # (N, G), (b,s,g) order

    # Finalize perplexity / diversity loss from the tiny counts in plain JAX.
    marginal = counts.reshape(num_tiles, G, Vp).sum(axis=0)[:, :V] / N
    perplexity = jnp.sum(jnp.exp(-jnp.sum(
        marginal * jnp.log(marginal + 1e-07), axis=-1)))
    num_codevectors = G * V
    diversity_loss = ((num_codevectors - perplexity) / num_codevectors
                      * diversity_weight)

    # PyTorch: codevector_idx.view(B, G, S) is a raw view of the flat
    # (b, s, g)-ordered index vector; reproduce the same raw reindex here.
    codevector_idx = idx.reshape(B, G, S)
    if G == 1:
        codevector_idx = codevector_idx[:, 0]
    return codevecs, codevector_idx, diversity_loss


if __name__ == "__main__":
    key = jax.random.PRNGKey(0)
    B, S = 2, 8
    codevector_dim = 32      # hidden size == self.dim
    num_groups = 2
    codebook_size = 16       # num_vars
    GV = num_groups * codebook_size
    Dg = codevector_dim // num_groups

    k1, k2, k3, k4 = jax.random.split(key, 4)
    hidden_states = jax.random.normal(k1, (B, S, codevector_dim), jnp.float32)

    # deterministic parameter init (nn.Linear-style uniform, codebook normal)
    bound = 1.0 / (codevector_dim ** 0.5)
    weight = jax.random.uniform(k2, (codevector_dim, GV), jnp.float32, -bound, bound)
    bias = jax.random.uniform(k3, (GV,), jnp.float32, -bound, bound)
    codevectors = jax.random.normal(k4, (1, GV, Dg), jnp.float32)

    cv_out, idx_out, div_loss = gumbel_vector_quantizer(
        hidden_states, weight, bias, codevectors,
        num_groups, codebook_size, diversity_weight=0.1)
    jax.block_until_ready((cv_out, idx_out, div_loss))

    assert cv_out.shape == (B, S, codevector_dim)
    assert idx_out.shape == (B, num_groups, S)
    assert bool(jnp.all((idx_out >= 0) & (idx_out < codebook_size)))

    # Self-consistency: each output group-chunk equals the codevector selected
    # by the returned index (the block-diagonal lookup is exact f32).
    idx_bsg = idx_out.reshape(B, S, num_groups)   # undo the raw (B, G, S) view
    cb_full = codevectors.reshape(GV, Dg)
    group_off = jnp.arange(num_groups, dtype=jnp.int32) * codebook_size
    expected = cb_full[idx_bsg + group_off]       # (B, S, G, Dg)
    assert bool(jnp.allclose(cv_out.reshape(B, S, num_groups, Dg), expected,
                             atol=1e-6))

    # Diversity loss recomputed from the hard indices in plain JAX.
    onehot_ref = jax.nn.one_hot(idx_bsg.reshape(B * S, num_groups),
                                codebook_size, dtype=jnp.float32)
    marg = onehot_ref.mean(axis=0)
    perp = jnp.sum(jnp.exp(-jnp.sum(marg * jnp.log(marg + 1e-07), axis=-1)))
    ref_loss = (GV - perp) / GV * 0.1
    assert bool(jnp.allclose(div_loss, ref_loss, rtol=1e-5, atol=1e-6))

    print("KERNEL_OK")
</pallas_src>

<mosaic_0001>
module attributes {stable_mosaic.version = 11 : i64} {
  func.func @gumbel_vq_kernel(%arg0: i32, %arg1: memref<16x32xbf16, #tpu.memory_space<vmem>>, %arg2: memref<32x256xbf16, #tpu.memory_space<vmem>>, %arg3: memref<1x256xf32, #tpu.memory_space<vmem>>, %arg4: memref<256x32xf32, #tpu.memory_space<vmem>>, %arg5: memref<16x32xf32, #tpu.memory_space<vmem>>, %arg6: memref<16x2xi32, #tpu.memory_space<vmem>>, %arg7: memref<1x1x256xf32, #tpu.memory_space<vmem>>) attributes {dimension_semantics = [#tpu.dimension_semantics<parallel>], iteration_bounds = array<i64: 1>, scalar_prefetch = 0 : i64, scratch_operands = 0 : i64, tpu.core_type = #tpu.core_type<tc>, window_params = [{transform_indices = @transform_0, window_bounds = array<i64: 16, 32>}, {pipeline_mode = #tpu.pipeline_mode<synchronous>, transform_indices = @transform_1, window_bounds = array<i64: 32, 256>}, {pipeline_mode = #tpu.pipeline_mode<synchronous>, transform_indices = @transform_2, window_bounds = array<i64: 1, 256>}, {pipeline_mode = #tpu.pipeline_mode<synchronous>, transform_indices = @transform_3, window_bounds = array<i64: 256, 32>}, {transform_indices = @transform_4, window_bounds = array<i64: 16, 32>}, {transform_indices = @transform_5, window_bounds = array<i64: 16, 2>}, {transform_indices = @transform_6, window_bounds = array<i64: 1, 1, 256>}]} {
    %c0 = arith.constant 0 : index
    %c0_0 = arith.constant 0 : index
    %0 = vector.load %arg1[%c0, %c0_0] : memref<16x32xbf16, #tpu.memory_space<vmem>>, vector<16x32xbf16>
    %c0_1 = arith.constant 0 : index
    %c0_2 = arith.constant 0 : index
    %1 = vector.load %arg2[%c0_1, %c0_2] : memref<32x256xbf16, #tpu.memory_space<vmem>>, vector<32x256xbf16>
    %cst = arith.constant dense<0.000000e+00> : vector<16x256xf32>
    %2 = tpu.matmul %0, %1, %cst {dimension_numbers = #tpu.dot_dimension_numbers<[1], [0], [0], [1], [0, 0, 1, 1], [], []>} : vector<16x32xbf16>, vector<32x256xbf16>, vector<16x256xf32> -> vector<16x256xf32>
    %c0_3 = arith.constant 0 : index
    %c0_4 = arith.constant 0 : index
    %3 = vector.load %arg3[%c0_3, %c0_4] : memref<1x256xf32, #tpu.memory_space<vmem>>, vector<1x256xf32>
    %4 = vector.broadcast %3 : vector<1x256xf32> to vector<16x256xf32>
    %5 = arith.addf %2, %4 : vector<16x256xf32>
    %6 = tpu.iota {dimensions = array<i32: 1>} : vector<16x128xi32>
    %7 = vector.extract_strided_slice %5 {offsets = [0, 0], sizes = [16, 128], strides = [1, 1]} : vector<16x256xf32> to vector<16x128xf32>
    %cst_5 = arith.constant dense<0xFF800000> : vector<16xf32>
    %8 = vector.multi_reduction <maximumf>, %7, %cst_5 [1] : vector<16x128xf32> to vector<16xf32>
    %9 = vector.shape_cast %8 : vector<16xf32> to vector<16x1xf32>
    %10 = vector.broadcast %9 : vector<16x1xf32> to vector<16x128xf32>
    %11 = arith.cmpf oeq, %7, %10 : vector<16x128xf32>
    %c128_i32 = arith.constant 128 : i32
    %12 = vector.broadcast %c128_i32 : i32 to vector<16x128xi32>
    %13 = arith.select %11, %6, %12 : vector<16x128xi1>, vector<16x128xi32>
    %cst_6 = arith.constant dense<2147483647> : vector<16xi32>
    %14 = vector.multi_reduction <minsi>, %13, %cst_6 [1] : vector<16x128xi32> to vector<16xi32>
    %15 = vector.shape_cast %14 : vector<16xi32> to vector<16x1xi32>
    %16 = vector.broadcast %15 : vector<16x1xi32> to vector<16x128xi32>
    %17 = arith.cmpi eq, %6, %16 : vector<16x128xi32>
    %18 = arith.extui %17 : vector<16x128xi1> to vector<16x128xi32>
    %19 = arith.sitofp %18 : vector<16x128xi32> to vector<16x128xf32>
    %20 = vector.extract_strided_slice %5 {offsets = [0, 128], sizes = [16, 128], strides = [1, 1]} : vector<16x256xf32> to vector<16x128xf32>
    %cst_7 = arith.constant dense<0xFF800000> : vector<16xf32>
    %21 = vector.multi_reduction <maximumf>, %20, %cst_7 [1] : vector<16x128xf32> to vector<16xf32>
    %22 = vector.shape_cast %21 : vector<16xf32> to vector<16x1xf32>
    %23 = vector.broadcast %22 : vector<16x1xf32> to vector<16x128xf32>
    %24 = arith.cmpf oeq, %20, %23 : vector<16x128xf32>
    %c128_i32_8 = arith.constant 128 : i32
    %25 = vector.broadcast %c128_i32_8 : i32 to vector<16x128xi32>
    %26 = arith.select %24, %6, %25 : vector<16x128xi1>, vector<16x128xi32>
    %cst_9 = arith.constant dense<2147483647> : vector<16xi32>
    %27 = vector.multi_reduction <minsi>, %26, %cst_9 [1] : vector<16x128xi32> to vector<16xi32>
    %28 = vector.shape_cast %27 : vector<16xi32> to vector<16x1xi32>
    %29 = vector.broadcast %28 : vector<16x1xi32> to vector<16x128xi32>
    %30 = arith.cmpi eq, %6, %29 : vector<16x128xi32>
    %31 = arith.extui %30 : vector<16x128xi1> to vector<16x128xi32>
    %32 = arith.sitofp %31 : vector<16x128xi32> to vector<16x128xf32>
    %33 = tpu.concatenate %19, %32 in 1 : vector<16x128xf32>, vector<16x128xf32> -> vector<16x256xf32>
    %c0_10 = arith.constant 0 : index
    %c0_11 = arith.constant 0 : index
    %34 = vector.load %arg4[%c0_10, %c0_11] : memref<256x32xf32, #tpu.memory_space<vmem>>, vector<256x32xf32>
    %cst_12 = arith.constant dense<0.000000e+00> : vector<16x32xf32>
    %35 = tpu.matmul %33, %34, %cst_12 {dimension_numbers = #tpu.dot_dimension_numbers<[1], [0], [0], [1], [0, 0, 1, 1], [], []>} : vector<16x256xf32>, vector<256x32xf32>, vector<16x32xf32> -> vector<16x32xf32>
    %c0_13 = arith.constant 0 : index
    %c0_14 = arith.constant 0 : index
    %36 = vector.load %arg5[%c0_13, %c0_14] : memref<16x32xf32, #tpu.memory_space<vmem>>, vector<16x32xf32>
    tpu.vector_store %arg5[%c0_13, %c0_14], %35 {strides = array<i32>} : memref<16x32xf32, #tpu.memory_space<vmem>>, vector<16x32xf32>,
    %37 = tpu.concatenate %15, %28 in 1 : vector<16x1xi32>, vector<16x1xi32> -> vector<16x2xi32>
    %c0_15 = arith.constant 0 : index
    %c0_16 = arith.constant 0 : index
    %38 = vector.load %arg6[%c0_15, %c0_16] : memref<16x2xi32, #tpu.memory_space<vmem>>, vector<16x2xi32>
    tpu.vector_store %arg6[%c0_15, %c0_16], %37 {strides = array<i32>} : memref<16x2xi32, #tpu.memory_space<vmem>>, vector<16x2xi32>,
    %cst_17 = arith.constant dense<0.000000e+00> : vector<256xf32>
    %39 = vector.multi_reduction <add>, %33, %cst_17 [0] : vector<16x256xf32> to vector<256xf32>
    %40 = vector.shape_cast %39 : vector<256xf32> to vector<1x256xf32>
    %c0_18 = arith.constant 0 : index
    %c0_19 = arith.constant 0 : index
    %c0_20 = arith.constant 0 : index
    %41 = vector.load %arg7[%c0_18, %c0_19, %c0_20] : memref<1x1x256xf32, #tpu.memory_space<vmem>>, vector<1x1x256xf32>
    %42 = vector.shape_cast %41 : vector<1x1x256xf32> to vector<1x256xf32>
    %43 = vector.shape_cast %40 : vector<1x256xf32> to vector<1x1x256xf32>
    tpu.vector_store %arg7[%c0_18, %c0_19, %c0_20], %43 {strides = array<i32>} : memref<1x1x256xf32, #tpu.memory_space<vmem>>, vector<1x1x256xf32>,
    return
  }
  func.func @transform_0(%arg0: i32) -> (i32, i32) {
    %c0_i32 = arith.constant 0 : i32
    %c0_i32_0 = arith.constant 0 : i32
    return %arg0, %c0_i32 : i32, i32
  }
  func.func @transform_1(%arg0: i32) -> (i32, i32) {
    %c0_i32 = arith.constant 0 : i32
    %c0_i32_0 = arith.constant 0 : i32
    %c0_i32_1 = arith.constant 0 : i32
    return %c0_i32, %c0_i32_0 : i32, i32
  }
  func.func @transform_2(%arg0: i32) -> (i32, i32) {
    %c0_i32 = arith.constant 0 : i32
    %c0_i32_0 = arith.constant 0 : i32
    %c0_i32_1 = arith.constant 0 : i32
    return %c0_i32, %c0_i32_0 : i32, i32
  }
  func.func @transform_3(%arg0: i32) -> (i32, i32) {
    %c0_i32 = arith.constant 0 : i32
    %c0_i32_0 = arith.constant 0 : i32
    %c0_i32_1 = arith.constant 0 : i32
    return %c0_i32, %c0_i32_0 : i32, i32
  }
  func.func @transform_4(%arg0: i32) -> (i32, i32) {
    %c0_i32 = arith.constant 0 : i32
    %c0_i32_0 = arith.constant 0 : i32
    return %arg0, %c0_i32 : i32, i32
  }
  func.func @transform_5(%arg0: i32) -> (i32, i32) {
    %c0_i32 = arith.constant 0 : i32
    %c0_i32_0 = arith.constant 0 : i32
    return %arg0, %c0_i32 : i32, i32
  }
  func.func @transform_6(%arg0: i32) -> (i32, i32, i32) {
    %c0_i32 = arith.constant 0 : i32
    %c0_i32_0 = arith.constant 0 : i32
    %c0_i32_1 = arith.constant 0 : i32
    return %arg0, %c0_i32, %c0_i32_0 : i32, i32, i32
  }
}

</mosaic_0001>

<llo_original>
// kernel: tpu_custom_call.1
$region0: #{tpu_custom_call.1}
  #allocation0 [shape = 'u32[]', space=smem, size = 0x4, offset = 0x4, fixed_abs, tag = 'smem constant byte address 0x4 - core index']
  #allocation1 [shape = 'u32[144,128]{1,0:T(1,128)}', space=vmem, size = 0x12000, scoped, tag = 'internal scratch']
  %s0 = inlined_call_operand.vmem [shape: bf16[16,32], index: 0, kind: input, shape index: {}]
  %s1 = inlined_call_operand.vmem [shape: bf16[32,256], index: 1, kind: input, shape index: {}]
  %s2 = inlined_call_operand.vmem [shape: f32[1,256], index: 2, kind: input, shape index: {}]
  %s3 = inlined_call_operand.vmem [shape: f32[256,32], index: 3, kind: input, shape index: {}]
  %s4 = inlined_call_operand.hbm [shape: f32[16,32], index: 4, kind: output, shape index: {0}]
  %s5 = inlined_call_operand.vmem [shape: s32[16,2], index: 5, kind: output, shape index: {1}]
  %s6 = inlined_call_operand.hbm [shape: f32[1,1,256], index: 6, kind: output, shape index: {2}]
  %7 = xla_tuple %s4, %s5, %s6
  %s8 = sld [smem:[#allocation0]]
  $region42: #{tpu_custom_call.1} parent=0
    _
  %s10 = ssub.s32 1, %s8
  %s11 = scalar_select 0, %s10, %s8
  $region1: #{tpu_custom_call.1} parent=0
    #allocation2 [shape = 'u8[8192]{0}', space=vmem, size = 0x2000, scoped, tag = 'output window, operand 0, single buffered']
    #allocation3 [shape = 's32[1]{0}', space=sflag, size = 0x4, scoped, tag = 'scoped memory for tpu_custom_call.1']
    #allocation4 [shape = 'u8[1024]{0}', space=vmem, size = 0x400, scoped, tag = 'output window, operand 2, single buffered']
    #allocation5 [shape = 's32[1]{0}', space=sflag, size = 0x4, scoped, tag = 'scoped memory for tpu_custom_call.1']
    %12 = vsyncpa [#allocation3], 0
    %13 = vsyncpa [#allocation5], 0
    // Predicated region
    $region2: #{tpu_custom_call.1} parent=1 // pred_check
      _
    $region3: #{tpu_custom_call.1} parent=1 // pred_check_branch
      %15 = sbr.rel (0) target = $region5
    $region4: #{tpu_custom_call.1} parent=1 // pred_region
      _
    $region5: #{tpu_custom_call.1} parent=1 // pred_fallthru
      _
    // Predicated region
    $region6: #{tpu_custom_call.1} parent=1 // pred_check
      _
    $region7: #{tpu_custom_call.1} parent=1 // pred_check_branch
      %17 = sbr.rel (0) target = $region9
    $region8: #{tpu_custom_call.1} parent=1 // pred_region
      _
    $region9: #{tpu_custom_call.1} parent=1 // pred_fallthru
      _
    // Predicated region
    $region10: #{tpu_custom_call.1} parent=1 // pred_check
      _
    $region11: #{tpu_custom_call.1} parent=1 // pred_check_branch
      %19 = sbr.rel (0) target = $region13
    $region12: #{tpu_custom_call.1} parent=1 // pred_region
      _
    $region13: #{tpu_custom_call.1} parent=1 // pred_fallthru
      _
    // Predicated region
    $region14: #{tpu_custom_call.1} parent=1 // pred_check
      _
    $region15: #{tpu_custom_call.1} parent=1 // pred_check_branch
      %21 = sbr.rel (0) target = $region17
    $region16: #{tpu_custom_call.1} parent=1 // pred_region
      _
    $region17: #{tpu_custom_call.1} parent=1 // pred_fallthru
      _
    %v23 = vld [vmem:[%s0] sm:$0xf]
    %v24 = vld [vmem:[%s0 + $0x4] sm:$0xf]
    %v25 = vld [vmem:[%s1] sm:$0xff]
    %v26 = vld [vmem:[%s1 + $0x8] sm:$0xff]
    %v27 = vld [vmem:[%s1 + $0x10] sm:$0xff]
    %v28 = vld [vmem:[%s1 + $0x18] sm:$0xff]
    %v29 = vld [vmem:[%s2] sm:$0x3]
    %v31 = vlaneseq
    %v32 = vshrl.u32 %v31, 7
    %v33 = vsub.s32 0, %v32
    %v34 = vrot.slane %v29, %v33
    %v35 = vlaneseq
    %v36 = vshrl.u32 %v35, 7
    %v37 = vsub.s32 1, %v36
    %v38 = vrot.slane %v29, %v37
    %v43 = vunpack.c.l.b16 %v23
    %v44 = vunpack.c.l.b16 %v24
    %v45 = vpack.c.b16 %v44, %v43
    %v50 = vunpack.c.l.b16 %v25
    %v51 = vunpack.c.h.b16 %v25
    %v52 = vunpack.c.l.b16 %v26
    %v53 = vunpack.c.h.b16 %v26
    %v54 = vunpack.c.l.b16 %v27
    %v55 = vunpack.c.h.b16 %v27
    %v56 = vunpack.c.l.b16 %v28
    %v57 = vunpack.c.h.b16 %v28
    %v58 = vpack.c.b16 %v52, %v50
    %v59 = vpack.c.b16 %v53, %v51
    %v60 = vpack.c.b16 %v56, %v54
    %v61 = vpack.c.b16 %v57, %v55
    %vm66 = vcmask 261120
    %v68 = vsel %vm66, %v45, 0
    %70 = vmatprep.subr.bf16.mxu0 %v59
    %71 = vmatpush1.bf16.msra.mxu0 %v58
    %72 = vmatprep.subr.bf16.mxu0 %v61
    %73 = vmatpush1.bf16.msra.mxu0 %v60
    %74 = vmatprep.subr.bf16.mxu0 0
    %75 = vmatpush1.bf16.msra.mxu0 0
    %76 = vmatprep.subr.bf16.mxu0 0
    %77 = vmatpush1.bf16.msra.mxu0 0
    %78 = vmatprep.subr.bf16.mxu0 0
    %79 = vmatpush1.bf16.msra.mxu0 0
    %80 = vmatprep.subr.bf16.mxu0 0
    %81 = vmatpush1.bf16.msra.mxu0 0
    %82 = vmatprep.subr.bf16.mxu0 0
    %83 = vmatpush1.bf16.msra.mxu0 0
    %84 = vmatprep.subr.bf16.mxu0 0
    %85 = vmatpush1.bf16.msra.mxu0 0
    %86 = vmatprep.subr.bf16.mxu0 0
    %87 = vmatpush1.bf16.msra.mxu0 0
    %88 = vmatprep.subr.bf16.mxu0 0
    %89 = vmatpush1.bf16.msra.mxu0 0
    %90 = vmatprep.subr.bf16.mxu0 0
    %91 = vmatpush1.bf16.msra.mxu0 0
    %92 = vmatprep.subr.bf16.mxu0 0
    %93 = vmatpush1.bf16.msra.mxu0 0
    %94 = vmatprep.subr.bf16.mxu0 0
    %95 = vmatpush1.bf16.msra.mxu0 0
    %96 = vmatprep.subr.bf16.mxu0 0
    %97 = vmatpush1.bf16.msra.mxu0 0
    %98 = vmatprep.subr.bf16.mxu0 0
    %99 = vmatpush1.bf16.msra.mxu0 0
    %100 = vmatprep.subr.bf16.mxu0 0
    %101 = vmatpush1.bf16.msra.mxu0 0
    %102 = vmatprep.mubr.bf16.mxu0 0
    %103 = vmatmul.mubr.bf16.gmra.mrb[0].mxu0 %v68
    %v104 = vpop.f32.mrb[0].mxu0
    %v105 = vadd.f32 %v34, %v104
    %v106 = vpop.f32.mrb[0].mxu0
    %v107 = vadd.f32 %v38, %v106
    %v108 = vpop.f32.mrb[0].mxu0
    %v109 = vadd.f32 %v34, %v108
    %v110 = vpop.f32.mrb[0].mxu0
    %v111 = vadd.f32 %v38, %v110
    %112 = vdwg.mxu0
    %v113 = vlaneseq
    %v114 = vand.u32 %v113, 127
    %115 = vmax.xlane.f32.xlu0 %v105
    %v116 = vpop.xlane.xlu0 %115
    %117 = vmax.xlane.f32.xlu0 %v109
    %v118 = vpop.xlane.xlu0 %117
    %vm119 = vcmp.eq.f32.partialorder %v105, %v116
    %vm120 = vcmp.eq.f32.partialorder %v109, %v118
    %v121 = vsel %vm119, %v114, 128
    %v122 = vsel %vm120, %v114, 128
    %v123 = vand.u32 %v121, 65535
    %v124 = vshra.s32 %v121, 16
    %v125 = vcvt.s32.f32 %v123
    %v126 = vcvt.s32.f32 %v124
    %127 = vmin.xlane.f32.xlu0 %v126
    %v128 = vpop.xlane.xlu0 %127
    %vm129 = vcmp.eq.f32.partialorder %v126, %v128
    %v130 = vsel %vm129, %v125, inf
    %131 = vmin.xlane.f32.xlu0 %v130
    %v132 = vpop.xlane.xlu0 %131
    %v133 = vcvt.f32.s32 %v132
    %v134 = vcvt.f32.s32 %v128
    %v135 = vshll.u32 %v134, 16
    %v136 = vadd.s32 %v135, %v133
    %v137 = vand.u32 %v122, 65535
    %v138 = vshra.s32 %v122, 16
    %v139 = vcvt.s32.f32 %v137
    %v140 = vcvt.s32.f32 %v138
    %141 = vmin.xlane.f32.xlu0 %v140
    %v142 = vpop.xlane.xlu0 %141
    %vm143 = vcmp.eq.f32.partialorder %v140, %v142
    %v144 = vsel %vm143, %v139, inf
    %145 = vmin.xlane.f32.xlu0 %v144
    %v146 = vpop.xlane.xlu0 %145
    %v147 = vcvt.f32.s32 %v146
    %v148 = vcvt.f32.s32 %v142
    %v149 = vshll.u32 %v148, 16
    %v150 = vadd.s32 %v149, %v147
    %vm151 = vcmp.eq.s32.totalorder %v114, %v136
    %vm152 = vcmp.eq.s32.totalorder %v114, %v150
    %v153 = vsel %vm151, 1, 0
    %v154 = vsel %vm152, 1, 0
    %v155 = vcvt.s32.f32 %v153
    %v156 = vcvt.s32.f32 %v154
    %157 = vmax.xlane.f32.xlu0 %v107
    %v158 = vpop.xlane.xlu0 %157
    %159 = vmax.xlane.f32.xlu0 %v111
    %v160 = vpop.xlane.xlu0 %159
    %vm161 = vcmp.eq.f32.partialorder %v107, %v158
    %vm162 = vcmp.eq.f32.partialorder %v111, %v160
    %v163 = vsel %vm161, %v114, 128
    %v164 = vsel %vm162, %v114, 128
    %v165 = vand.u32 %v163, 65535
    %v166 = vshra.s32 %v163, 16
    %v167 = vcvt.s32.f32 %v165
    %v168 = vcvt.s32.f32 %v166
    %169 = vmin.xlane.f32.xlu0 %v168
    %v170 = vpop.xlane.xlu0 %169
    %vm171 = vcmp.eq.f32.partialorder %v168, %v170
    %v172 = vsel %vm171, %v167, inf
    %173 = vmin.xlane.f32.xlu0 %v172
    %v174 = vpop.xlane.xlu0 %173
    %v175 = vcvt.f32.s32 %v174
    %v176 = vcvt.f32.s32 %v170
    %v177 = vshll.u32 %v176, 16
    %v178 = vadd.s32 %v177, %v175
    %v179 = vand.u32 %v164, 65535
    %v180 = vshra.s32 %v164, 16
    %v181 = vcvt.s32.f32 %v179
    %v182 = vcvt.s32.f32 %v180
    %183 = vmin.xlane.f32.xlu0 %v182
    %v184 = vpop.xlane.xlu0 %183
    %vm185 = vcmp.eq.f32.partialorder %v182, %v184
    %v186 = vsel %vm185, %v181, inf
    %187 = vmin.xlane.f32.xlu0 %v186
    %v188 = vpop.xlane.xlu0 %187
    %v189 = vcvt.f32.s32 %v188
    %v190 = vcvt.f32.s32 %v184
    %v191 = vshll.u32 %v190, 16
    %v192 = vadd.s32 %v191, %v189
    %vm193 = vcmp.eq.s32.totalorder %v114, %v178
    %vm194 = vcmp.eq.s32.totalorder %v114, %v192
    %v195 = vsel %vm193, 1, 0
    %v196 = vsel %vm194, 1, 0
    %v197 = vcvt.s32.f32 %v195
    %v198 = vcvt.s32.f32 %v196
    %v199 = vld [vmem:[%s3] sm:$0xff]
    %v200 = vld [vmem:[%s3 + $0x8] sm:$0xff]
    %v201 = vld [vmem:[%s3 + $0x10] sm:$0xff]
    %v202 = vld [vmem:[%s3 + $0x18] sm:$0xff]
    %v203 = vld [vmem:[%s3 + $0x20] sm:$0xff]
    %v204 = vld [vmem:[%s3 + $0x28] sm:$0xff]
    %v205 = vld [vmem:[%s3 + $0x30] sm:$0xff]
    %v206 = vld [vmem:[%s3 + $0x38] sm:$0xff]
    %v207 = vld [vmem:[%s3 + $0x40] sm:$0xff]
    %v208 = vld [vmem:[%s3 + $0x48] sm:$0xff]
    %v209 = vld [vmem:[%s3 + $0x50] sm:$0xff]
    %v210 = vld [vmem:[%s3 + $0x58] sm:$0xff]
    %v211 = vld [vmem:[%s3 + $0x60] sm:$0xff]
    %v212 = vld [vmem:[%s3 + $0x68] sm:$0xff]
    %v213 = vld [vmem:[%s3 + $0x70] sm:$0xff]
    %v214 = vld [vmem:[%s3 + $0x78] sm:$0xff]
    %v215 = vld [vmem:[%s3 + $0x80] sm:$0xff]
    %v216 = vld [vmem:[%s3 + $0x88] sm:$0xff]
    %v217 = vld [vmem:[%s3 + $0x90] sm:$0xff]
    %v218 = vld [vmem:[%s3 + $0x98] sm:$0xff]
    %v219 = vld [vmem:[%s3 + $0xa0] sm:$0xff]
    %v220 = vld [vmem:[%s3 + $0xa8] sm:$0xff]
    %v221 = vld [vmem:[%s3 + $0xb0] sm:$0xff]
    %v222 = vld [vmem:[%s3 + $0xb8] sm:$0xff]
    %v223 = vld [vmem:[%s3 + $0xc0] sm:$0xff]
    %v224 = vld [vmem:[%s3 + $0xc8] sm:$0xff]
    %v225 = vld [vmem:[%s3 + $0xd0] sm:$0xff]
    %v226 = vld [vmem:[%s3 + $0xd8] sm:$0xff]
    %v227 = vld [vmem:[%s3 + $0xe0] sm:$0xff]
    %v228 = vld [vmem:[%s3 + $0xe8] sm:$0xff]
    %v229 = vld [vmem:[%s3 + $0xf0] sm:$0xff]
    %v230 = vld [vmem:[%s3 + $0xf8] sm:$0xff]
    %231 = vmatprep.subr.mxu0 0.0
    %232 = vmatpush1.msra.mxu0 %v199
    %233 = vmatprep.subr.mxu0 0.0
    %234 = vmatpush1.msra.mxu0 %v200
    %235 = vmatprep.subr.mxu0 0.0
    %236 = vmatpush1.msra.mxu0 %v201
    %237 = vmatprep.subr.mxu0 0.0
    %238 = vmatpush1.msra.mxu0 %v202
    %239 = vmatprep.subr.mxu0 0.0
    %240 = vmatpush1.msra.mxu0 %v203
    %241 = vmatprep.subr.mxu0 0.0
    %242 = vmatpush1.msra.mxu0 %v204
    %243 = vmatprep.subr.mxu0 0.0
    %244 = vmatpush1.msra.mxu0 %v205
    %245 = vmatprep.subr.mxu0 0.0
    %246 = vmatpush1.msra.mxu0 %v206
    %247 = vmatprep.subr.mxu0 0.0
    %248 = vmatpush1.msra.mxu0 %v207
    %249 = vmatprep.subr.mxu0 0.0
    %250 = vmatpush1.msra.mxu0 %v208
    %251 = vmatprep.subr.mxu0 0.0
    %252 = vmatpush1.msra.mxu0 %v209
    %253 = vmatprep.subr.mxu0 0.0
    %254 = vmatpush1.msra.mxu0 %v210
    %255 = vmatprep.subr.mxu0 0.0
    %256 = vmatpush1.msra.mxu0 %v211
    %257 = vmatprep.subr.mxu0 0.0
    %258 = vmatpush1.msra.mxu0 %v212
    %259 = vmatprep.subr.mxu0 0.0
    %260 = vmatpush1.msra.mxu0 %v213
    %261 = vmatprep.subr.mxu0 0.0
    %262 = vmatpush1.msra.mxu0 %v214
    %263 = vmatprep.subr.mxu0 0.0
    %264 = vmatpush1.msra.mxu0 %v215
    %265 = vmatprep.subr.mxu0 0.0
    %266 = vmatpush1.msra.mxu0 %v216
    %267 = vmatprep.subr.mxu0 0.0
    %268 = vmatpush1.msra.mxu0 %v217
    %269 = vmatprep.subr.mxu0 0.0
    %270 = vmatpush1.msra.mxu0 %v218
    %271 = vmatprep.subr.mxu0 0.0
    %272 = vmatpush1.msra.mxu0 %v219
    %273 = vmatprep.subr.mxu0 0.0
    %274 = vmatpush1.msra.mxu0 %v220
    %275 = vmatprep.subr.mxu0 0.0
    %276 = vmatpush1.msra.mxu0 %v221
    %277 = vmatprep.subr.mxu0 0.0
    %278 = vmatpush1.msra.mxu0 %v222
    %279 = vmatprep.subr.mxu0 0.0
    %280 = vmatpush1.msra.mxu0 %v223
    %281 = vmatprep.subr.mxu0 0.0
    %282 = vmatpush1.msra.mxu0 %v224
    %283 = vmatprep.subr.mxu0 0.0
    %284 = vmatpush1.msra.mxu0 %v225
    %285 = vmatprep.subr.mxu0 0.0
    %286 = vmatpush1.msra.mxu0 %v226
    %287 = vmatprep.subr.mxu0 0.0
    %288 = vmatpush1.msra.mxu0 %v227
    %289 = vmatprep.subr.mxu0 0.0
    %290 = vmatpush1.msra.mxu0 %v228
    %291 = vmatprep.subr.mxu0 0.0
    %292 = vmatpush1.msra.mxu0 %v229
    %293 = vmatprep.subr.mxu0 0.0
    %294 = vmatpush1.msra.mxu0 %v230
    %295 = vmatprep.mubr.f32.mxu0 %v197
    %296 = vmatmul.mubr.f32.gmra.mrb[0].mxu0 %v155
    %v297 = vpop.f32.mrb[0].mxu0
    %v298 = vadd.f32 0.0, %v297
    %v299 = vpop.f32.mrb[0].mxu0
    %300 = vmatprep.mubr.f32.mxu0 %v198
    %301 = vmatmul.mubr.f32.gmra.mrb[0].mxu0 %v156
    %v302 = vpop.f32.mrb[0].mxu0
    %v303 = vadd.f32 0.0, %v302
    %v304 = vpop.f32.mrb[0].mxu0
    %305 = vdwg.mxu0
    %306 = vst.msk [vmem:[#allocation2] sm:$0xff] %vm66, %v298
    %307 = vst.msk [vmem:[#allocation2 + $0x8] sm:$0xff] %vm66, %v303
    %vm308 = vcmask 7168
    %v309 = vsel %vm308, %v136, %v178
    %v310 = vsel %vm308, %v150, %v192
    %vm311 = vcmask 15360
    %312 = vst.msk [vmem:[%s5] sm:$0xff] %vm311, %v309
    %313 = vst.msk [vmem:[%s5 + $0x8] sm:$0xff] %vm311, %v310
    %v314 = vadd.f32 %v155, %v156
    %v315 = vrot.slane %v314, 4
    %v316 = vadd.f32 %v314, %v315
    %v317 = vrot.slane %v316, 2
    %v318 = vadd.f32 %v316, %v317
    %v319 = vrot.slane %v318, 1
    %v320 = vadd.f32 %v318, %v319
    %v321 = vadd.f32 %v197, %v198
    %v322 = vrot.slane %v321, 4
    %v323 = vadd.f32 %v321, %v322
    %v324 = vrot.slane %v323, 2
    %v325 = vadd.f32 %v323, %v324
    %v326 = vrot.slane %v325, 1
    %v327 = vadd.f32 %v325, %v326
    %v330 = vcombine.low %v320, %v327
    %v332 = vunpack.c.l.s4 1966171168
    %v333 = vunpack.c.0.s8 %v332
    %v334 = vlaneseq
    %v335 = vshrl.u32 %v334, 7
    %v336 = vsub.s32 %v333, %v335
    %v337 = vrot.slane %v330, %v336
    %v339 = vunpack.c.l.s4 1966171168
    %v340 = vunpack.c.0.s8 %v339
    %v341 = vlaneseq
    %v342 = vshrl.u32 %v341, 7
    %v343 = vsub.s32 %v340, %v342
    %v344 = vrot.slane %v337, %v343
    %v346 = vlaneseq
    %vm347 = vcmp.ge.s32.totalorder %v346, 0
    %vm348 = vcmp.lt.s32.totalorder %v346, 256
    %vm349 = vmand %vm347, %vm348
    %350 = vst.msk [vmem:[#allocation4] sm:$0x3] %vm349, %v344
    // Predicated region
    $region18: #{tpu_custom_call.1} parent=1 // pred_check
      _
    $region19: #{tpu_custom_call.1} parent=1 // pred_check_branch
      %352 = sbr.rel (0) target = $region21
    $region20: #{tpu_custom_call.1} parent=1 // pred_region
      %s354 = ssub.s32 256, 256
      %355 = vsyncadd [#allocation3], %s354
      %s356 = sshll.u32 [#allocation2], 4
      %s357 = int_to_ptr.vmem [resolvable:$true] %s356
      %362 = dma.vmem_to_hbm [thread:$0]  %s357, 256, %s4, [#allocation3], 128, 128, 8
    $region21: #{tpu_custom_call.1} parent=1 // pred_fallthru
      _
    // Predicated region
    $region22: #{tpu_custom_call.1} parent=1 // pred_check
      _
    $region23: #{tpu_custom_call.1} parent=1 // pred_check_branch
      %364 = sbr.rel (0) target = $region25
    $region24: #{tpu_custom_call.1} parent=1 // pred_region
      _
    $region25: #{tpu_custom_call.1} parent=1 // pred_fallthru
      _
    // Predicated region
    $region26: #{tpu_custom_call.1} parent=1 // pred_check
      _
    $region27: #{tpu_custom_call.1} parent=1 // pred_check_branch
      %366 = sbr.rel (0) target = $region29
    $region28: #{tpu_custom_call.1} parent=1 // pred_region
      %s368 = ssub.s32 32, 32
      %369 = vsyncadd [#allocation5], %s368
      %s371 = sshll.u32 [#allocation4], 4
      %s372 = int_to_ptr.vmem [resolvable:$true] %s371
      %374 = dma.vmem_to_hbm [thread:$0]  %s372, 32, %s6, [#allocation5]
    $region29: #{tpu_custom_call.1} parent=1 // pred_fallthru
      _
    // Predicated region
    $region30: #{tpu_custom_call.1} parent=1 // pred_check
      _
    $region31: #{tpu_custom_call.1} parent=1 // pred_check_branch
      %376 = sbr.rel (0) target = $region33
    $region32: #{tpu_custom_call.1} parent=1 // pred_region
      %377 = dma.done [#allocation3], 256
    $region33: #{tpu_custom_call.1} parent=1 // pred_fallthru
      _
    // Predicated region
    $region34: #{tpu_custom_call.1} parent=1 // pred_check
      _
    $region35: #{tpu_custom_call.1} parent=1 // pred_check_branch
      %379 = sbr.rel (0) target = $region37
    $region36: #{tpu_custom_call.1} parent=1 // pred_region
      _
    $region37: #{tpu_custom_call.1} parent=1 // pred_fallthru
      _
    // Predicated region
    $region38: #{tpu_custom_call.1} parent=1 // pred_check
      _
    $region39: #{tpu_custom_call.1} parent=1 // pred_check_branch
      %381 = sbr.rel (0) target = $region41
    $region40: #{tpu_custom_call.1} parent=1 // pred_region
      %382 = dma.done [#allocation5], 32
    $region41: #{tpu_custom_call.1} parent=1 // pred_fallthru
      _
    %383 = vsyncpa [#allocation3], 1
    %384 = vsyncpa [#allocation5], 1

</llo_original>
